<compile_context>
chip_gen: v7x
topology: tpu7x:2x2x1
jax: 0.10.0
libtpu: 0.0.40
codegen_flags: <defaults>
</compile_context>

<pallas_src>
import functools

import jax
import jax.numpy as jnp
from jax import lax
from jax.experimental import pallas as pl
from jax.experimental.pallas import tpu as pltpu


def _round_up(a: int, b: int) -> int:
    return (a + b - 1) // b * b


def _pruned_linear_kernel(x_ref, w_ref, m_ref, b_ref, o_ref, acc_ref,
                          *, compute_dtype=None):
    k = pl.program_id(2)

    @pl.when(k == 0)
    def _():
        acc_ref[...] = jnp.zeros_like(acc_ref)

    # Apply pruning mask on the VPU (mask arrives as int8 {0,1}).
    w_pruned = w_ref[...] * m_ref[...].astype(w_ref.dtype)          # (tn, tk)
    lhs = x_ref[...]                                                # (tm, tk)
    if compute_dtype is not None:
        # bf16 MXU path for big layers on v6e/v7x; accumulation stays f32.
        lhs = lhs.astype(compute_dtype)
        w_pruned = w_pruned.astype(compute_dtype)

    # Contract K (dim 1 of both operands): no explicit transpose, MXU-friendly,
    # output is [tm, tn] with N on the lane axis.
    acc_ref[...] += lax.dot_general(
        lhs, w_pruned,
        dimension_numbers=(((1,), (1,)), ((), ())),
        preferred_element_type=jnp.float32,
    )

    @pl.when(k == pl.num_programs(2) - 1)
    def _():
        # Bias add only once, in the epilogue (f32), then cast to output dtype.
        o_ref[...] = (acc_ref[...] + b_ref[...]).astype(o_ref.dtype)


def pruned_linear(x, weight, mask, bias=None, *,
                  tm_target=256, tn_target=256, tk_target=512,
                  compute_dtype=None):
    """y = x @ (weight * mask).T + bias as a tiled Pallas TPU kernel."""
    M, K = x.shape
    N, K2 = weight.shape
    assert K == K2, (K, K2)
    out_dtype = x.dtype

    # PrunedLinear masks are {0,1}; ship as int8 to cut mask HBM bytes ~4x.
    # TODO(synk): if the mask were ever non-binary, pass it in weight dtype.
    mask_i8 = (mask != 0).astype(jnp.int8)

    if bias is None:
        bias = jnp.zeros((N,), dtype=jnp.float32)
    bias_f32 = bias.astype(jnp.float32)

    # Tile sizes: lane axis (last block dim) multiple of 128, sublane multiple
    # of 8; shrink targets so tiles always divide the padded dims. The target
    # config (256, 256, 512) double-buffers to only a few MiB of VMEM, well
    # inside the 32 MiB scoped budget on v5e/v6e/v7x even with the int8 mask
    # stream.
    tm = tm_target if M >= tm_target else _round_up(M, 8)
    tn = tn_target if N >= tn_target else 128
    tk = tk_target if K >= tk_target else 128

    Mp, Np, Kp = _round_up(M, tm), _round_up(N, tn), _round_up(K, tk)

    # Zero-pad to tile multiples: zero K columns contribute nothing to the dot,
    # zero N rows are sliced away below.
    xp = jnp.pad(x, ((0, Mp - M), (0, Kp - K))) if (Mp != M or Kp != K) else x
    wp = (jnp.pad(weight, ((0, Np - N), (0, Kp - K)))
          if (Np != N or Kp != K) else weight)
    mp = (jnp.pad(mask_i8, ((0, Np - N), (0, Kp - K)))
          if (Np != N or Kp != K) else mask_i8)
    bp = jnp.pad(bias_f32, (0, Np - N)).reshape(1, Np)

    grid = (Mp // tm, Np // tn, Kp // tk)

    cost = pl.CostEstimate(
        flops=2 * M * N * K,
        transcendentals=0,
        bytes_accessed=(xp.size * xp.dtype.itemsize
                        + wp.size * wp.dtype.itemsize
                        + mp.size                      # int8 mask
                        + bp.size * 4
                        + Mp * Np * jnp.dtype(out_dtype).itemsize),
    )

    kernel = functools.partial(_pruned_linear_kernel, compute_dtype=compute_dtype)

    out = pl.pallas_call(
        kernel,
        out_shape=jax.ShapeDtypeStruct((Mp, Np), out_dtype),
        grid_spec=pltpu.PrefetchScalarGridSpec(
            num_scalar_prefetch=0,
            grid=grid,
            in_specs=[
                pl.BlockSpec((tm, tk), lambda i, j, k: (i, k)),  # x   [M, K]
                pl.BlockSpec((tn, tk), lambda i, j, k: (j, k)),  # w   [N, K]
                pl.BlockSpec((tn, tk), lambda i, j, k: (j, k)),  # mask[N, K] i8
                pl.BlockSpec((1, tn), lambda i, j, k: (0, j)),   # bias[1, N]
            ],
            out_specs=pl.BlockSpec((tm, tn), lambda i, j, k: (i, j)),
            scratch_shapes=[pltpu.VMEM((tm, tn), jnp.float32)],
        ),
        compiler_params=pltpu.CompilerParams(
            dimension_semantics=("parallel", "parallel", "arbitrary"),
            vmem_limit_bytes=32 * 1024 * 1024,
        ),
        cost_estimate=cost,
    )(xp, wp, mp, bp)

    return out[:M, :N]


if __name__ == "__main__":
    # Deterministic small shapes consistent with the module's forward.
    batch, in_features, out_features = 8, 32, 64

    key = jax.random.PRNGKey(0)
    kx, kw, kb, km = jax.random.split(key, 4)

    x = jax.random.normal(kx, (batch, in_features), dtype=jnp.float32)
    weight = jax.random.normal(kw, (out_features, in_features), dtype=jnp.float32)
    bias = jax.random.normal(kb, (out_features,), dtype=jnp.float32)
    # 50%-dense pruning mask (deterministic), same shape as weight.
    mask = (jax.random.uniform(km, (out_features, in_features)) > 0.5).astype(
        jnp.float32
    )

    y = pruned_linear(x, weight, mask, bias)
    y = jax.block_until_ready(y)

    # Pure-JAX reference for correctness.
    y_ref = x @ (weight * mask).T + bias
    assert y.shape == (batch, out_features)
    assert jnp.allclose(y, y_ref, atol=1e-5, rtol=1e-5), (
        float(jnp.max(jnp.abs(y - y_ref)))
    )

    print("KERNEL_OK")
</pallas_src>

<mosaic_0001>
module attributes {stable_mosaic.version = 11 : i64} {
  func.func @_pruned_linear_kernel(%arg0: i32, %arg1: i32, %arg2: i32, %arg3: memref<8x128xf32, #tpu.memory_space<vmem>>, %arg4: memref<128x128xf32, #tpu.memory_space<vmem>>, %arg5: memref<128x128xi8, #tpu.memory_space<vmem>>, %arg6: memref<1x128xf32, #tpu.memory_space<vmem>>, %arg7: memref<8x128xf32, #tpu.memory_space<vmem>>, %arg8: memref<8x128xf32, #tpu.memory_space<vmem>>) attributes {dimension_semantics = [#tpu.dimension_semantics<parallel>, #tpu.dimension_semantics<parallel>, #tpu.dimension_semantics<arbitrary>], iteration_bounds = array<i64: 1, 1, 1>, scalar_prefetch = 0 : i64, scratch_operands = 1 : i64, tpu.core_type = #tpu.core_type<tc>, window_params = [{transform_indices = @transform_0, window_bounds = array<i64: 8, 128>}, {transform_indices = @transform_1, window_bounds = array<i64: 128, 128>}, {transform_indices = @transform_2, window_bounds = array<i64: 128, 128>}, {transform_indices = @transform_3, window_bounds = array<i64: 1, 128>}, {transform_indices = @transform_4, window_bounds = array<i64: 8, 128>}]} {
    %c0_i32 = arith.constant 0 : i32
    %0 = arith.cmpi eq, %arg2, %c0_i32 : i32
    %1 = arith.extui %0 : i1 to i32
    %c0_i32_0 = arith.constant 0 : i32
    %2 = arith.cmpi ne, %1, %c0_i32_0 : i32
    scf.if %2 {
      %cst_12 = arith.constant 0.000000e+00 : f32
      %15 = vector.broadcast %cst_12 : f32 to vector<8x128xf32>
      %c0_13 = arith.constant 0 : index
      %c0_14 = arith.constant 0 : index
      %16 = vector.load %arg8[%c0_13, %c0_14] : memref<8x128xf32, #tpu.memory_space<vmem>>, vector<8x128xf32>
      tpu.vector_store %arg8[%c0_13, %c0_14], %15 {strides = array<i32>} : memref<8x128xf32, #tpu.memory_space<vmem>>, vector<8x128xf32>,
    } else {
    }
    %c0 = arith.constant 0 : index
    %c0_1 = arith.constant 0 : index
    %3 = vector.load %arg4[%c0, %c0_1] : memref<128x128xf32, #tpu.memory_space<vmem>>, vector<128x128xf32>
    %c0_2 = arith.constant 0 : index
    %c0_3 = arith.constant 0 : index
    %4 = vector.load %arg5[%c0_2, %c0_3] : memref<128x128xi8, #tpu.memory_space<vmem>>, vector<128x128xi8>
    %5 = arith.sitofp %4 : vector<128x128xi8> to vector<128x128xf32>
    %6 = arith.mulf %3, %5 : vector<128x128xf32>
    %c0_4 = arith.constant 0 : index
    %c0_5 = arith.constant 0 : index
    %7 = vector.load %arg3[%c0_4, %c0_5] : memref<8x128xf32, #tpu.memory_space<vmem>>, vector<8x128xf32>
    %c0_6 = arith.constant 0 : index
    %c0_7 = arith.constant 0 : index
    %8 = vector.load %arg8[%c0_6, %c0_7] : memref<8x128xf32, #tpu.memory_space<vmem>>, vector<8x128xf32>
    %cst = arith.constant dense<0.000000e+00> : vector<8x128xf32>
    %9 = tpu.matmul %7, %6, %cst {dimension_numbers = #tpu.dot_dimension_numbers<[1], [1], [0], [0], [0, 0, 1, 0], [], []>} : vector<8x128xf32>, vector<128x128xf32>, vector<8x128xf32> -> vector<8x128xf32>
    %10 = arith.addf %8, %9 : vector<8x128xf32>
    %c0_8 = arith.constant 0 : index
    %c0_9 = arith.constant 0 : index
    %11 = vector.load %arg8[%c0_8, %c0_9] : memref<8x128xf32, #tpu.memory_space<vmem>>, vector<8x128xf32>
    tpu.vector_store %arg8[%c0_8, %c0_9], %10 {strides = array<i32>} : memref<8x128xf32, #tpu.memory_space<vmem>>, vector<8x128xf32>,
    %c0_i32_10 = arith.constant 0 : i32
    %12 = arith.cmpi eq, %arg2, %c0_i32_10 : i32
    %13 = arith.extui %12 : i1 to i32
    %c0_i32_11 = arith.constant 0 : i32
    %14 = arith.cmpi ne, %13, %c0_i32_11 : i32
    scf.if %14 {
      %c0_12 = arith.constant 0 : index
      %c0_13 = arith.constant 0 : index
      %15 = vector.load %arg8[%c0_12, %c0_13] : memref<8x128xf32, #tpu.memory_space<vmem>>, vector<8x128xf32>
      %c0_14 = arith.constant 0 : index
      %c0_15 = arith.constant 0 : index
      %16 = vector.load %arg6[%c0_14, %c0_15] : memref<1x128xf32, #tpu.memory_space<vmem>>, vector<1x128xf32>
      %17 = vector.broadcast %16 : vector<1x128xf32> to vector<8x128xf32>
      %18 = arith.addf %15, %17 : vector<8x128xf32>
      %c0_16 = arith.constant 0 : index
      %c0_17 = arith.constant 0 : index
      %19 = vector.load %arg7[%c0_16, %c0_17] : memref<8x128xf32, #tpu.memory_space<vmem>>, vector<8x128xf32>
      tpu.vector_store %arg7[%c0_16, %c0_17], %18 {strides = array<i32>} : memref<8x128xf32, #tpu.memory_space<vmem>>, vector<8x128xf32>,
    } else {
    }
    return
  }
  func.func @transform_0(%arg0: i32, %arg1: i32, %arg2: i32) -> (i32, i32) {
    %c0_i32 = arith.constant 0 : i32
    return %arg0, %arg2 : i32, i32
  }
  func.func @transform_1(%arg0: i32, %arg1: i32, %arg2: i32) -> (i32, i32) {
    %c0_i32 = arith.constant 0 : i32
    return %arg1, %arg2 : i32, i32
  }
  func.func @transform_2(%arg0: i32, %arg1: i32, %arg2: i32) -> (i32, i32) {
    %c0_i32 = arith.constant 0 : i32
    return %arg1, %arg2 : i32, i32
  }
  func.func @transform_3(%arg0: i32, %arg1: i32, %arg2: i32) -> (i32, i32) {
    %c0_i32 = arith.constant 0 : i32
    %c0_i32_0 = arith.constant 0 : i32
    return %c0_i32, %arg1 : i32, i32
  }
  func.func @transform_4(%arg0: i32, %arg1: i32, %arg2: i32) -> (i32, i32) {
    %c0_i32 = arith.constant 0 : i32
    return %arg0, %arg1 : i32, i32
  }
}

</mosaic_0001>

<llo_original>
// kernel: tpu_custom_call.1
$region0: #{tpu_custom_call.1}
  #allocation0 [shape = 'u32[]', space=smem, size = 0x4, offset = 0x4, fixed_abs, tag = 'smem constant byte address 0x4 - core index']
  #allocation1 [shape = 'u32[144,128]{1,0:T(1,128)}', space=vmem, size = 0x12000, scoped, tag = 'internal scratch']
  #allocation2 [shape = 'f32[8,128]{1,0:T(8,128)}', space=vmem, size = 0x1000, scoped, tag = 'scratch operand']
  %s0 = inlined_call_operand.hbm [shape: f32[8,128], index: 0, kind: input, shape index: {}]
  %s1 = inlined_call_operand.hbm [shape: f32[128,128], index: 1, kind: input, shape index: {}]
  %s2 = inlined_call_operand.hbm [shape: s8[128,128], index: 2, kind: input, shape index: {}]
  %s3 = inlined_call_operand.vmem [shape: f32[1,128], index: 3, kind: input, shape index: {}]
  %s4 = inlined_call_operand.hbm [shape: f32[8,128], index: 4, kind: output, shape index: {}]
  %s5 = sld [smem:[#allocation0]]
  $region46: #{tpu_custom_call.1} parent=0
    _
  %s7 = ssub.s32 1, %s5
  %s8 = scalar_select 0, %s7, %s5
  $region1: #{tpu_custom_call.1} parent=0
    #allocation3 [shape = 'u8[4096]{0}', space=vmem, size = 0x1000, scoped, tag = 'input window, operand 0, single buffered']
    #allocation4 [shape = 's32[1]{0}', space=sflag, size = 0x4, scoped, tag = 'scoped memory for tpu_custom_call.1']
    #allocation5 [shape = 's32[1]{0}', space=sflag, size = 0x4, scoped, tag = 'scoped memory for tpu_custom_call.1']
    #allocation6 [shape = 'u8[65536]{0}', space=vmem, size = 0x10000, scoped, tag = 'input window, operand 1, single buffered']
    #allocation7 [shape = 's32[1]{0}', space=sflag, size = 0x4, scoped, tag = 'scoped memory for tpu_custom_call.1']
    #allocation8 [shape = 'u8[16384]{0}', space=vmem, size = 0x4000, scoped, tag = 'input window, operand 2, single buffered']
    #allocation9 [shape = 'u8[4096]{0}', space=vmem, size = 0x1000, scoped, tag = 'output window, operand 0, single buffered']
    %9 = vsyncpa [#allocation4], 0
    %10 = vsyncpa [#allocation7], 0
    %11 = vsyncpa [#allocation5], 0
    // Predicated region
    $region2: #{tpu_custom_call.1} parent=1 // pred_check
      _
    $region3: #{tpu_custom_call.1} parent=1 // pred_check_branch
      %13 = sbr.rel (0) target = $region5
    $region4: #{tpu_custom_call.1} parent=1 // pred_region
      %s15 = ssub.s32 128, 128
      %16 = vsyncadd [#allocation4], %s15
      %s18 = sshll.u32 [#allocation3], 4
      %s19 = int_to_ptr.vmem [resolvable:$true] %s18
      %21 = dma.hbm_to_vmem [thread:$0]  %s0, 128, %s19, [#allocation4]
    $region5: #{tpu_custom_call.1} parent=1 // pred_fallthru
      _
    // Predicated region
    $region6: #{tpu_custom_call.1} parent=1 // pred_check
      _
    $region7: #{tpu_custom_call.1} parent=1 // pred_check_branch
      %23 = sbr.rel (0) target = $region9
    $region8: #{tpu_custom_call.1} parent=1 // pred_region
      %s25 = ssub.s32 2048, 2048
      %26 = vsyncadd [#allocation7], %s25
      %s27 = sshll.u32 [#allocation6], 4
      %s28 = int_to_ptr.vmem [resolvable:$true] %s27
      %33 = dma.hbm_to_vmem [thread:$0]  %s1, 2048, %s28, [#allocation7], 128, 128, 8
    $region9: #{tpu_custom_call.1} parent=1 // pred_fallthru
      _
    // Predicated region
    $region10: #{tpu_custom_call.1} parent=1 // pred_check
      _
    $region11: #{tpu_custom_call.1} parent=1 // pred_check_branch
      %35 = sbr.rel (0) target = $region13
    $region12: #{tpu_custom_call.1} parent=1 // pred_region
      %s37 = ssub.s32 512, 512
      %38 = vsyncadd [#allocation7], %s37
      %s39 = sshll.u32 [#allocation8], 4
      %s40 = int_to_ptr.vmem [resolvable:$true] %s39
      %45 = dma.hbm_to_vmem [thread:$0]  %s2, 512, %s40, [#allocation7], 128, 128, 8
    $region13: #{tpu_custom_call.1} parent=1 // pred_fallthru
      _
    // Predicated region
    $region14: #{tpu_custom_call.1} parent=1 // pred_check
      _
    $region15: #{tpu_custom_call.1} parent=1 // pred_check_branch
      %47 = sbr.rel (0) target = $region17
    $region16: #{tpu_custom_call.1} parent=1 // pred_region
      _
    $region17: #{tpu_custom_call.1} parent=1 // pred_fallthru
      _
    // Predicated region
    $region18: #{tpu_custom_call.1} parent=1 // pred_check
      _
    $region19: #{tpu_custom_call.1} parent=1 // pred_check_branch
      %49 = sbr.rel (0) target = $region21
    $region20: #{tpu_custom_call.1} parent=1 // pred_region
      %50 = dma.done [#allocation4], 128
    $region21: #{tpu_custom_call.1} parent=1 // pred_fallthru
      _
    // Predicated region
    $region22: #{tpu_custom_call.1} parent=1 // pred_check
      _
    $region23: #{tpu_custom_call.1} parent=1 // pred_check_branch
      %52 = sbr.rel (0) target = $region25
    $region24: #{tpu_custom_call.1} parent=1 // pred_region
      %53 = dma.done [#allocation7], 2048
    $region25: #{tpu_custom_call.1} parent=1 // pred_fallthru
      _
    // Predicated region
    $region26: #{tpu_custom_call.1} parent=1 // pred_check
      _
    $region27: #{tpu_custom_call.1} parent=1 // pred_check_branch
      %55 = sbr.rel (0) target = $region29
    $region28: #{tpu_custom_call.1} parent=1 // pred_region
      %56 = dma.done [#allocation7], 512
    $region29: #{tpu_custom_call.1} parent=1 // pred_fallthru
      _
    %p57 = scmp.eq.s32.totalorder 0, 0
    // Predicated region
    $region30: #{tpu_custom_call.1} parent=1 // pred_check
      %p58 = pneg %p57
    $region31: #{tpu_custom_call.1} parent=1 // pred_check_branch
      %60 = sbr.rel (%p58) target = $region33
    $region32: #{tpu_custom_call.1} parent=1 // pred_region
      %61 = vst [vmem:[#allocation2] sm:$0xff] 0.0
    $region33: #{tpu_custom_call.1} parent=1 // pred_fallthru
      _
    %v62 = vld [vmem:[#allocation6] sm:$0xff]
    %v63 = vld [vmem:[#allocation6 + $0x8] sm:$0xff]
    %v64 = vld [vmem:[#allocation6 + $0x10] sm:$0xff]
    %v65 = vld [vmem:[#allocation6 + $0x18] sm:$0xff]
    %v66 = vld [vmem:[#allocation6 + $0x20] sm:$0xff]
    %v67 = vld [vmem:[#allocation6 + $0x28] sm:$0xff]
    %v68 = vld [vmem:[#allocation6 + $0x30] sm:$0xff]
    %v69 = vld [vmem:[#allocation6 + $0x38] sm:$0xff]
    %v70 = vld [vmem:[#allocation6 + $0x40] sm:$0xff]
    %v71 = vld [vmem:[#allocation6 + $0x48] sm:$0xff]
    %v72 = vld [vmem:[#allocation6 + $0x50] sm:$0xff]
    %v73 = vld [vmem:[#allocation6 + $0x58] sm:$0xff]
    %v74 = vld [vmem:[#allocation6 + $0x60] sm:$0xff]
    %v75 = vld [vmem:[#allocation6 + $0x68] sm:$0xff]
    %v76 = vld [vmem:[#allocation6 + $0x70] sm:$0xff]
    %v77 = vld [vmem:[#allocation6 + $0x78] sm:$0xff]
    %v78 = vld [vmem:[#allocation8] sm:$0xff]
    %v79 = vld [vmem:[#allocation8 + $0x8] sm:$0xff]
    %v80 = vld [vmem:[#allocation8 + $0x10] sm:$0xff]
    %v81 = vld [vmem:[#allocation8 + $0x18] sm:$0xff]
    %v82 = vunpack.c.0.s8 %v78
    %v83 = vunpack.c.1.s8 %v78
    %v84 = vunpack.c.2.s8 %v78
    %v85 = vunpack.c.3.s8 %v78
    %v86 = vunpack.c.0.s8 %v79
    %v87 = vunpack.c.1.s8 %v79
    %v88 = vunpack.c.2.s8 %v79
    %v89 = vunpack.c.3.s8 %v79
    %v90 = vunpack.c.0.s8 %v80
    %v91 = vunpack.c.1.s8 %v80
    %v92 = vunpack.c.2.s8 %v80
    %v93 = vunpack.c.3.s8 %v80
    %v94 = vunpack.c.0.s8 %v81
    %v95 = vunpack.c.1.s8 %v81
    %v96 = vunpack.c.2.s8 %v81
    %v97 = vunpack.c.3.s8 %v81
    %v98 = vcvt.s32.f32 %v82
    %v99 = vcvt.s32.f32 %v83
    %v100 = vcvt.s32.f32 %v84
    %v101 = vcvt.s32.f32 %v85
    %v102 = vcvt.s32.f32 %v86
    %v103 = vcvt.s32.f32 %v87
    %v104 = vcvt.s32.f32 %v88
    %v105 = vcvt.s32.f32 %v89
    %v106 = vcvt.s32.f32 %v90
    %v107 = vcvt.s32.f32 %v91
    %v108 = vcvt.s32.f32 %v92
    %v109 = vcvt.s32.f32 %v93
    %v110 = vcvt.s32.f32 %v94
    %v111 = vcvt.s32.f32 %v95
    %v112 = vcvt.s32.f32 %v96
    %v113 = vcvt.s32.f32 %v97
    %v114 = vmul.f32 %v62, %v98
    %v115 = vmul.f32 %v63, %v99
    %v116 = vmul.f32 %v64, %v100
    %v117 = vmul.f32 %v65, %v101
    %v118 = vmul.f32 %v66, %v102
    %v119 = vmul.f32 %v67, %v103
    %v120 = vmul.f32 %v68, %v104
    %v121 = vmul.f32 %v69, %v105
    %v122 = vmul.f32 %v70, %v106
    %v123 = vmul.f32 %v71, %v107
    %v124 = vmul.f32 %v72, %v108
    %v125 = vmul.f32 %v73, %v109
    %v126 = vmul.f32 %v74, %v110
    %v127 = vmul.f32 %v75, %v111
    %v128 = vmul.f32 %v76, %v112
    %v129 = vmul.f32 %v77, %v113
    %v130 = vld [vmem:[#allocation3] sm:$0xff]
    %v131 = vld [vmem:[#allocation2] sm:$0xff]
    %132 = vmatprep.subr.mxu0 0.0
    %133 = vmatpush1.xpose.msra.mxu0 %v114
    %134 = vmatprep.subr.mxu0 0.0
    %135 = vmatpush1.xpose.msra.mxu0 %v115
    %136 = vmatprep.subr.mxu0 0.0
    %137 = vmatpush1.xpose.msra.mxu0 %v116
    %138 = vmatprep.subr.mxu0 0.0
    %139 = vmatpush1.xpose.msra.mxu0 %v117
    %140 = vmatprep.subr.mxu0 0.0
    %141 = vmatpush1.xpose.msra.mxu0 %v118
    %142 = vmatprep.subr.mxu0 0.0
    %143 = vmatpush1.xpose.msra.mxu0 %v119
    %144 = vmatprep.subr.mxu0 0.0
    %145 = vmatpush1.xpose.msra.mxu0 %v120
    %146 = vmatprep.subr.mxu0 0.0
    %147 = vmatpush1.xpose.msra.mxu0 %v121
    %148 = vmatprep.subr.mxu0 0.0
    %149 = vmatpush1.xpose.msra.mxu0 %v122
    %150 = vmatprep.subr.mxu0 0.0
    %151 = vmatpush1.xpose.msra.mxu0 %v123
    %152 = vmatprep.subr.mxu0 0.0
    %153 = vmatpush1.xpose.msra.mxu0 %v124
    %154 = vmatprep.subr.mxu0 0.0
    %155 = vmatpush1.xpose.msra.mxu0 %v125
    %156 = vmatprep.subr.mxu0 0.0
    %157 = vmatpush1.xpose.msra.mxu0 %v126
    %158 = vmatprep.subr.mxu0 0.0
    %159 = vmatpush1.xpose.msra.mxu0 %v127
    %160 = vmatprep.subr.mxu0 0.0
    %161 = vmatpush1.xpose.msra.mxu0 %v128
    %162 = vmatprep.subr.mxu0 0.0
    %163 = vmatpush1.xpose.msra.mxu0 %v129
    %164 = vmatprep.subr.mxu0 0.0
    %165 = vmatpush1.xpose.msra.mxu0 0.0
    %166 = vmatprep.subr.mxu0 0.0
    %167 = vmatpush1.xpose.msra.mxu0 0.0
    %168 = vmatprep.subr.mxu0 0.0
    %169 = vmatpush1.xpose.msra.mxu0 0.0
    %170 = vmatprep.subr.mxu0 0.0
    %171 = vmatpush1.xpose.msra.mxu0 0.0
    %172 = vmatprep.subr.mxu0 0.0
    %173 = vmatpush1.xpose.msra.mxu0 0.0
    %174 = vmatprep.subr.mxu0 0.0
    %175 = vmatpush1.xpose.msra.mxu0 0.0
    %176 = vmatprep.subr.mxu0 0.0
    %177 = vmatpush1.xpose.msra.mxu0 0.0
    %178 = vmatprep.subr.mxu0 0.0
    %179 = vmatpush1.xpose.msra.mxu0 0.0
    %180 = vmatprep.subr.mxu0 0.0
    %181 = vmatpush1.xpose.msra.mxu0 0.0
    %182 = vmatprep.subr.mxu0 0.0
    %183 = vmatpush1.xpose.msra.mxu0 0.0
    %184 = vmatprep.subr.mxu0 0.0
    %185 = vmatpush1.xpose.msra.mxu0 0.0
    %186 = vmatprep.subr.mxu0 0.0
    %187 = vmatpush1.xpose.msra.mxu0 0.0
    %188 = vmatprep.subr.mxu0 0.0
    %189 = vmatpush1.xpose.msra.mxu0 0.0
    %190 = vmatprep.subr.mxu0 0.0
    %191 = vmatpush1.xpose.msra.mxu0 0.0
    %192 = vmatprep.subr.mxu0 0.0
    %193 = vmatpush1.xpose.msra.mxu0 0.0
    %194 = vmatprep.subr.mxu0 0.0
    %195 = vmatpush1.xpose.msra.mxu0 0.0
    %196 = vmatprep.mubr.f32.mxu0 0.0
    %197 = vmatmul.mubr.f32.gmra.mrb[0].mxu0 %v130
    %v198 = vpop.f32.mrb[0].mxu0
    %v199 = vadd.f32 0.0, %v198
    %v200 = vpop.f32.mrb[0].mxu0
    %201 = vdwg.mxu0
    %v202 = vadd.f32 %v131, %v199
    %203 = vst [vmem:[#allocation2] sm:$0xff] %v202
    // Predicated region
    $region34: #{tpu_custom_call.1} parent=1 // pred_check
      %p204 = pneg %p57
    $region35: #{tpu_custom_call.1} parent=1 // pred_check_branch
      %206 = sbr.rel (%p204) target = $region37
    $region36: #{tpu_custom_call.1} parent=1 // pred_region
      %v207 = vld [vmem:[#allocation2] sm:$0xff]
      %v208 = vld [vmem:[%s3] sm:$0x1]
      %v210 = vlaneseq
      %v211 = vshrl.u32 %v210, 7
      %v212 = vsub.s32 0, %v211
      %v213 = vrot.slane %v208, %v212
      %v215 = vadd.f32 %v207, %v213
      %216 = vst [vmem:[#allocation9] sm:$0xff] %v215
    $region37: #{tpu_custom_call.1} parent=1 // pred_fallthru
      _
    // Predicated region
    $region38: #{tpu_custom_call.1} parent=1 // pred_check
      _
    $region39: #{tpu_custom_call.1} parent=1 // pred_check_branch
      %218 = sbr.rel (0) target = $region41
    $region40: #{tpu_custom_call.1} parent=1 // pred_region
      %s220 = ssub.s32 128, 128
      %221 = vsyncadd [#allocation5], %s220
      %s223 = sshll.u32 [#allocation9], 4
      %s224 = int_to_ptr.vmem [resolvable:$true] %s223
      %226 = dma.vmem_to_hbm [thread:$0]  %s224, 128, %s4, [#allocation5]
    $region41: #{tpu_custom_call.1} parent=1 // pred_fallthru
      _
    // Predicated region
    $region42: #{tpu_custom_call.1} parent=1 // pred_check
      _
    $region43: #{tpu_custom_call.1} parent=1 // pred_check_branch
      %228 = sbr.rel (0) target = $region45
    $region44: #{tpu_custom_call.1} parent=1 // pred_region
      %229 = dma.done [#allocation5], 128
    $region45: #{tpu_custom_call.1} parent=1 // pred_fallthru
      _
    %230 = vsyncpa [#allocation4], 1
    %231 = vsyncpa [#allocation7], 1
    %232 = vsyncpa [#allocation5], 1

</llo_original>
